<compile_context>
chip_gen: v7x
topology: tpu7x:2x2x1
jax: 0.10.0
libtpu: 0.0.40
codegen_flags: <defaults>
</compile_context>

<pallas_src>
import functools

import jax
import jax.numpy as jnp
from jax import lax
from jax.experimental import pallas as pl
from jax.experimental.pallas import tpu as pltpu

LEAK = 0.2
DROP_P = 0.2
KEEP_P = 1.0 - DROP_P
LANE = 128
# Integer dropout threshold on 24 uniform bits: P(bits < thr) = 0.8 (to within 2^-24).
_KEEP_THRESHOLD = int(KEEP_P * (1 << 24))


def _round_up(v, m):
    return ((v + m - 1) // m) * m


def _wrap_i32(v):
    """Wrap a Python int into signed-int32 range (two's complement)."""
    v &= 0xFFFFFFFF
    return v - (1 << 32) if v >= (1 << 31) else v


def _hash_base(seed, row0, shape):
    """Per-element counter base for the dropout PRNG (portable int32 VPU ops only)."""
    rows = lax.broadcasted_iota(jnp.int32, shape, 0) + row0
    cols = lax.broadcasted_iota(jnp.int32, shape, 1)
    mixed = (rows * jnp.int32(_wrap_i32(0x9E3779B9))) ^ (
        cols * jnp.int32(_wrap_i32(0x85EBCA6B)))
    return mixed + seed * jnp.int32(747796405)


def _keep_mask(base, layer):
    """lowbias32 finisher -> 24 uniform bits -> integer-threshold keep mask (p=0.8)."""
    x = base + jnp.int32(_wrap_i32(layer * 0xC2B2AE35))
    x = x ^ lax.shift_right_logical(x, 16)
    x = x * jnp.int32(_wrap_i32(0x7FEB352D))
    x = x ^ lax.shift_right_logical(x, 15)
    x = x * jnp.int32(_wrap_i32(0x846CA68B))
    x = x ^ lax.shift_right_logical(x, 16)
    bits24 = lax.shift_right_logical(x, 8)
    return bits24 < jnp.int32(_KEEP_THRESHOLD)


def _encoder_kernel(seed_ref, x_ref,
                    w1_ref, b1_ref, w2_ref, b2_ref, w3_ref, b3_ref,
                    w4_ref, b4_ref, w5_ref, b5_ref,
                    o_ref):
    seed = seed_ref[0]
    tile_m = x_ref.shape[0]
    row0 = pl.program_id(0) * tile_m
    hidden_pad = w1_ref.shape[1]

    # Shared hash base for the four (tile_m, hidden_pad) dropout layers (hoisted;
    # per-layer work is only the lowbias32 finisher + one compare).
    base = _hash_base(seed, row0, (tile_m, hidden_pad))

    def linear(h, w_ref, b_ref):
        # bf16 MXU matmul with f32 accumulation; bias added in f32 on the VPU.
        return jnp.dot(h.astype(w_ref.dtype), w_ref[...],
                       preferred_element_type=jnp.float32) + b_ref[...]

    def act_drop(h, layer):
        h = jnp.where(h >= 0.0, h, LEAK * h)        # LeakyReLU(0.2)
        keep = _keep_mask(base, layer)               # Dropout(p=0.2) keep mask
        # 1/keep_p inverted-dropout scaling is pre-folded into w2..w5
        # (prepare_params), so dropout here is a plain select.
        return jnp.where(keep, h, 0.0)

    h = act_drop(linear(x_ref[...], w1_ref, b1_ref), 1)
    h = act_drop(linear(h, w2_ref, b2_ref), 2)
    h = act_drop(linear(h, w3_ref, b3_ref), 3)
    h = act_drop(linear(h, w4_ref, b4_ref), 4)
    o_ref[...] = linear(h, w5_ref, b5_ref).astype(o_ref.dtype)


def init_params(key, input_dim, hidden_dim, latent_dim):
    """nn.Linear-style init U(-1/sqrt(fan_in), 1/sqrt(fan_in)).
    Weights stored pre-transposed as (in, out); biases as (1, out)."""
    dims = [(input_dim, hidden_dim),
            (hidden_dim, hidden_dim),
            (hidden_dim, hidden_dim),
            (hidden_dim, hidden_dim),
            (hidden_dim, latent_dim)]
    params = {}
    for idx, (fan_in, fan_out) in enumerate(dims, start=1):
        key, kw, kb = jax.random.split(key, 3)
        bound = 1.0 / jnp.sqrt(jnp.float32(fan_in))
        params[f"w{idx}"] = jax.random.uniform(
            kw, (fan_in, fan_out), jnp.float32, -bound, bound)
        params[f"b{idx}"] = jax.random.uniform(
            kb, (1, fan_out), jnp.float32, -bound, bound)
    return params


def prepare_params(params, *, weight_dtype=jnp.bfloat16):
    """One-time parameter prep (off the hot path):
      * zero-pad every feature dim to a multiple of 128 lanes,
      * fold the 1/keep_p inverted-dropout scale into w2..w5,
      * cast weights to bf16 for the MXU fast path (halves resident VMEM).
    Zero padding leaves the math on real lanes exactly unchanged."""
    prepped = {}
    for idx in range(1, 6):
        w = params[f"w{idx}"].astype(jnp.float32)
        b = params[f"b{idx}"].astype(jnp.float32)
        fan_in, fan_out = w.shape
        in_pad = _round_up(fan_in, LANE)
        out_pad = _round_up(fan_out, LANE)
        if idx >= 2:
            w = w * (1.0 / KEEP_P)           # fold inverted-dropout scale
        w = jnp.pad(w, ((0, in_pad - fan_in), (0, out_pad - fan_out)))
        b = jnp.pad(b, ((0, 0), (0, out_pad - fan_out)))
        prepped[f"w{idx}"] = w.astype(weight_dtype)
        prepped[f"b{idx}"] = b               # biases stay f32 (post-MXU add)
    return prepped


def encoder_forward(x, prepped, seed, *, latent_dim, tile_m=None):
    """x: (B, input_dim) float32.  prepped: output of prepare_params."""
    B, in_dim = x.shape
    in_pad = prepped["w1"].shape[0]
    latent_pad = prepped["w5"].shape[1]
    w_dtype = prepped["w1"].dtype

    # Largest batch-row tile that comfortably fits VMEM; a single grid step for
    # small batches.
    if tile_m is None:
        tile_m = min(_round_up(B, 8), 512)
    B_pad = _round_up(B, tile_m)

    if (B_pad, in_pad) != (B, in_dim):
        x = jnp.pad(x, ((0, B_pad - B), (0, in_pad - in_dim)))
    # Cast once in the wrapper: halves the input DMA; the kernel would cast
    # before the MXU anyway, so the math is identical.
    x = x.astype(w_dtype)

    seed_arr = jnp.full((1,), seed, dtype=jnp.int32)

    def full_spec(shape):
        # Grid-invariant (resident) weight/bias block.
        return pl.BlockSpec(shape, lambda i: (0,) * len(shape))

    grid = (B_pad // tile_m,)

    out = pl.pallas_call(
        _encoder_kernel,
        out_shape=jax.ShapeDtypeStruct((B_pad, latent_pad), jnp.float32),
        grid_spec=pltpu.PrefetchScalarGridSpec(
            num_scalar_prefetch=0,
            grid=grid,
            in_specs=[
                pl.BlockSpec(memory_space=pltpu.MemorySpace.SMEM),   # seed
                pl.BlockSpec((tile_m, in_pad), lambda i: (i, 0)),    # x row tile
                full_spec(prepped["w1"].shape), full_spec(prepped["b1"].shape),
                full_spec(prepped["w2"].shape), full_spec(prepped["b2"].shape),
                full_spec(prepped["w3"].shape), full_spec(prepped["b3"].shape),
                full_spec(prepped["w4"].shape), full_spec(prepped["b4"].shape),
                full_spec(prepped["w5"].shape), full_spec(prepped["b5"].shape),
            ],
            out_specs=pl.BlockSpec((tile_m, latent_pad), lambda i: (i, 0)),
        ),
        compiler_params=pltpu.CompilerParams(
            dimension_semantics=("parallel",)),   # independent batch tiles
    )(seed_arr, x,
      prepped["w1"], prepped["b1"], prepped["w2"], prepped["b2"],
      prepped["w3"], prepped["b3"], prepped["w4"], prepped["b4"],
      prepped["w5"], prepped["b5"])

    return out[:B, :latent_dim]


def _reference_forward(x, prepped, seed, *, latent_dim, tile_m):
    """Pure-JAX replica of the kernel math (same hash masks, same bf16 casts)."""
    B, in_dim = x.shape
    in_pad = prepped["w1"].shape[0]
    hidden_pad = prepped["w1"].shape[1]
    w_dtype = prepped["w1"].dtype
    B_pad = _round_up(B, tile_m)
    xp = jnp.pad(x, ((0, B_pad - B), (0, in_pad - in_dim))).astype(w_dtype)

    def lin(h, i):
        return jnp.dot(h.astype(w_dtype), prepped[f"w{i}"],
                       preferred_element_type=jnp.float32) + prepped[f"b{i}"]

    tiles = []
    for t in range(B_pad // tile_m):
        row0 = t * tile_m
        base = _hash_base(jnp.int32(seed), row0, (tile_m, hidden_pad))
        h = lin(xp[row0:row0 + tile_m], 1)
        for layer in range(1, 5):
            h = jnp.where(h >= 0.0, h, LEAK * h)
            h = jnp.where(_keep_mask(base, layer), h, 0.0)
            h = lin(h, layer + 1)
        tiles.append(h)
    return jnp.concatenate(tiles, axis=0)[:B, :latent_dim]


if __name__ == "__main__":
    INPUT_DIM, HIDDEN_DIM, LATENT_DIM = 16, 32, 8
    BATCH = 16
    SEED = 1234

    key = jax.random.PRNGKey(0)
    key, kx = jax.random.split(key)
    x = jax.random.normal(kx, (BATCH, INPUT_DIM), dtype=jnp.float32)

    raw_params = init_params(key, INPUT_DIM, HIDDEN_DIM, LATENT_DIM)
    prepped = prepare_params(raw_params)

    fwd = jax.jit(functools.partial(encoder_forward, latent_dim=LATENT_DIM))
    out = fwd(x, prepped, SEED)
    jax.block_until_ready(out)

    assert out.shape == (BATCH, LATENT_DIM), out.shape
    assert bool(jnp.all(jnp.isfinite(out)))

    # Correctness check against a pure-JAX replica using the identical
    # counter-based dropout masks (loose tolerance: only MXU accumulation
    # order can differ).
    tile_m = min(_round_up(BATCH, 8), 512)
    ref = _reference_forward(x, prepped, SEED, latent_dim=LATENT_DIM, tile_m=tile_m)
    jax.block_until_ready(ref)
    assert jnp.allclose(out, ref, rtol=1e-3, atol=1e-3), (
        float(jnp.max(jnp.abs(out - ref))))

    print("KERNEL_OK")
</pallas_src>

<mosaic_0001>
module attributes {stable_mosaic.version = 11 : i64} {
  func.func @_encoder_kernel(%arg0: i32, %arg1: memref<1xi32, #tpu.memory_space<smem>>, %arg2: memref<16x128xbf16, #tpu.memory_space<vmem>>, %arg3: memref<128x128xbf16, #tpu.memory_space<vmem>>, %arg4: memref<1x128xf32, #tpu.memory_space<vmem>>, %arg5: memref<128x128xbf16, #tpu.memory_space<vmem>>, %arg6: memref<1x128xf32, #tpu.memory_space<vmem>>, %arg7: memref<128x128xbf16, #tpu.memory_space<vmem>>, %arg8: memref<1x128xf32, #tpu.memory_space<vmem>>, %arg9: memref<128x128xbf16, #tpu.memory_space<vmem>>, %arg10: memref<1x128xf32, #tpu.memory_space<vmem>>, %arg11: memref<128x128xbf16, #tpu.memory_space<vmem>>, %arg12: memref<1x128xf32, #tpu.memory_space<vmem>>, %arg13: memref<16x128xf32, #tpu.memory_space<vmem>>) attributes {dimension_semantics = [#tpu.dimension_semantics<parallel>], iteration_bounds = array<i64: 1>, scalar_prefetch = 0 : i64, scratch_operands = 0 : i64, tpu.core_type = #tpu.core_type<tc>, window_params = [{transform_indices = @transform_0, window_bounds = array<i64: 1>}, {transform_indices = @transform_1, window_bounds = array<i64: 16, 128>}, {pipeline_mode = #tpu.pipeline_mode<synchronous>, transform_indices = @transform_2, window_bounds = array<i64: 128, 128>}, {pipeline_mode = #tpu.pipeline_mode<synchronous>, transform_indices = @transform_3, window_bounds = array<i64: 1, 128>}, {pipeline_mode = #tpu.pipeline_mode<synchronous>, transform_indices = @transform_4, window_bounds = array<i64: 128, 128>}, {pipeline_mode = #tpu.pipeline_mode<synchronous>, transform_indices = @transform_5, window_bounds = array<i64: 1, 128>}, {pipeline_mode = #tpu.pipeline_mode<synchronous>, transform_indices = @transform_6, window_bounds = array<i64: 128, 128>}, {pipeline_mode = #tpu.pipeline_mode<synchronous>, transform_indices = @transform_7, window_bounds = array<i64: 1, 128>}, {pipeline_mode = #tpu.pipeline_mode<synchronous>, transform_indices = @transform_8, window_bounds = array<i64: 128, 128>}, {pipeline_mode = #tpu.pipeline_mode<synchronous>, transform_indices = @transform_9, window_bounds = array<i64: 1, 128>}, {pipeline_mode = #tpu.pipeline_mode<synchronous>, transform_indices = @transform_10, window_bounds = array<i64: 128, 128>}, {pipeline_mode = #tpu.pipeline_mode<synchronous>, transform_indices = @transform_11, window_bounds = array<i64: 1, 128>}, {transform_indices = @transform_12, window_bounds = array<i64: 16, 128>}]} {
    %c0 = arith.constant 0 : index
    %0 = memref.load %arg1[%c0] : memref<1xi32, #tpu.memory_space<smem>>
    %c16_i32 = arith.constant 16 : i32
    %1 = arith.muli %arg0, %c16_i32 : i32
    %2 = tpu.iota {dimensions = array<i32: 0>} : vector<16x128xi32>
    %3 = vector.broadcast %1 : i32 to vector<16x128xi32>
    %4 = arith.addi %2, %3 : vector<16x128xi32>
    %5 = tpu.iota {dimensions = array<i32: 1>} : vector<16x128xi32>
    %c-1640531527_i32 = arith.constant -1640531527 : i32
    %6 = vector.broadcast %c-1640531527_i32 : i32 to vector<16x128xi32>
    %7 = arith.muli %4, %6 : vector<16x128xi32>
    %c-2048144789_i32 = arith.constant -2048144789 : i32
    %8 = vector.broadcast %c-2048144789_i32 : i32 to vector<16x128xi32>
    %9 = arith.muli %5, %8 : vector<16x128xi32>
    %10 = arith.xori %7, %9 : vector<16x128xi32>
    %c747796405_i32 = arith.constant 747796405 : i32
    %11 = arith.muli %0, %c747796405_i32 : i32
    %12 = vector.broadcast %11 : i32 to vector<16x128xi32>
    %13 = arith.addi %10, %12 : vector<16x128xi32>
    %c0_0 = arith.constant 0 : index
    %c0_1 = arith.constant 0 : index
    %14 = vector.load %arg2[%c0_0, %c0_1] : memref<16x128xbf16, #tpu.memory_space<vmem>>, vector<16x128xbf16>
    %c0_2 = arith.constant 0 : index
    %c0_3 = arith.constant 0 : index
    %15 = vector.load %arg3[%c0_2, %c0_3] : memref<128x128xbf16, #tpu.memory_space<vmem>>, vector<128x128xbf16>
    %cst = arith.constant dense<0.000000e+00> : vector<16x128xf32>
    %16 = tpu.matmul %14, %15, %cst {dimension_numbers = #tpu.dot_dimension_numbers<[1], [0], [0], [1], [0, 0, 1, 1], [], []>} : vector<16x128xbf16>, vector<128x128xbf16>, vector<16x128xf32> -> vector<16x128xf32>
    %c0_4 = arith.constant 0 : index
    %c0_5 = arith.constant 0 : index
    %17 = vector.load %arg4[%c0_4, %c0_5] : memref<1x128xf32, #tpu.memory_space<vmem>>, vector<1x128xf32>
    %18 = vector.broadcast %17 : vector<1x128xf32> to vector<16x128xf32>
    %19 = arith.addf %16, %18 : vector<16x128xf32>
    %cst_6 = arith.constant 0.000000e+00 : f32
    %20 = vector.broadcast %cst_6 : f32 to vector<16x128xf32>
    %21 = arith.cmpf oge, %19, %20 : vector<16x128xf32>
    %cst_7 = arith.constant 2.000000e-01 : f32
    %22 = vector.broadcast %cst_7 : f32 to vector<16x128xf32>
    %23 = arith.mulf %22, %19 : vector<16x128xf32>
    %24 = arith.select %21, %19, %23 : vector<16x128xi1>, vector<16x128xf32>
    %c-1028477387_i32 = arith.constant -1028477387 : i32
    %25 = vector.broadcast %c-1028477387_i32 : i32 to vector<16x128xi32>
    %26 = arith.addi %13, %25 : vector<16x128xi32>
    %c16_i32_8 = arith.constant 16 : i32
    %27 = vector.broadcast %c16_i32_8 : i32 to vector<16x128xi32>
    %28 = arith.shrui %26, %27 : vector<16x128xi32>
    %29 = arith.xori %26, %28 : vector<16x128xi32>
    %c2146121005_i32 = arith.constant 2146121005 : i32
    %30 = vector.broadcast %c2146121005_i32 : i32 to vector<16x128xi32>
    %31 = arith.muli %29, %30 : vector<16x128xi32>
    %c15_i32 = arith.constant 15 : i32
    %32 = vector.broadcast %c15_i32 : i32 to vector<16x128xi32>
    %33 = arith.shrui %31, %32 : vector<16x128xi32>
    %34 = arith.xori %31, %33 : vector<16x128xi32>
    %c-2073254261_i32 = arith.constant -2073254261 : i32
    %35 = vector.broadcast %c-2073254261_i32 : i32 to vector<16x128xi32>
    %36 = arith.muli %34, %35 : vector<16x128xi32>
    %c16_i32_9 = arith.constant 16 : i32
    %37 = vector.broadcast %c16_i32_9 : i32 to vector<16x128xi32>
    %38 = arith.shrui %36, %37 : vector<16x128xi32>
    %39 = arith.xori %36, %38 : vector<16x128xi32>
    %c8_i32 = arith.constant 8 : i32
    %40 = vector.broadcast %c8_i32 : i32 to vector<16x128xi32>
    %41 = arith.shrui %39, %40 : vector<16x128xi32>
    %c13421772_i32 = arith.constant 13421772 : i32
    %42 = vector.broadcast %c13421772_i32 : i32 to vector<16x128xi32>
    %43 = arith.cmpi slt, %41, %42 : vector<16x128xi32>
    %cst_10 = arith.constant 0.000000e+00 : f32
    %44 = vector.broadcast %cst_10 : f32 to vector<16x128xf32>
    %45 = arith.select %43, %24, %44 : vector<16x128xi1>, vector<16x128xf32>
    %46 = arith.truncf %45 : vector<16x128xf32> to vector<16x128xbf16>
    %c0_11 = arith.constant 0 : index
    %c0_12 = arith.constant 0 : index
    %47 = vector.load %arg5[%c0_11, %c0_12] : memref<128x128xbf16, #tpu.memory_space<vmem>>, vector<128x128xbf16>
    %cst_13 = arith.constant dense<0.000000e+00> : vector<16x128xf32>
    %48 = tpu.matmul %46, %47, %cst_13 {dimension_numbers = #tpu.dot_dimension_numbers<[1], [0], [0], [1], [0, 0, 1, 1], [], []>} : vector<16x128xbf16>, vector<128x128xbf16>, vector<16x128xf32> -> vector<16x128xf32>
    %c0_14 = arith.constant 0 : index
    %c0_15 = arith.constant 0 : index
    %49 = vector.load %arg6[%c0_14, %c0_15] : memref<1x128xf32, #tpu.memory_space<vmem>>, vector<1x128xf32>
    %50 = vector.broadcast %49 : vector<1x128xf32> to vector<16x128xf32>
    %51 = arith.addf %48, %50 : vector<16x128xf32>
    %cst_16 = arith.constant 0.000000e+00 : f32
    %52 = vector.broadcast %cst_16 : f32 to vector<16x128xf32>
    %53 = arith.cmpf oge, %51, %52 : vector<16x128xf32>
    %cst_17 = arith.constant 2.000000e-01 : f32
    %54 = vector.broadcast %cst_17 : f32 to vector<16x128xf32>
    %55 = arith.mulf %54, %51 : vector<16x128xf32>
    %56 = arith.select %53, %51, %55 : vector<16x128xi1>, vector<16x128xf32>
    %c-2056954774_i32 = arith.constant -2056954774 : i32
    %57 = vector.broadcast %c-2056954774_i32 : i32 to vector<16x128xi32>
    %58 = arith.addi %13, %57 : vector<16x128xi32>
    %c16_i32_18 = arith.constant 16 : i32
    %59 = vector.broadcast %c16_i32_18 : i32 to vector<16x128xi32>
    %60 = arith.shrui %58, %59 : vector<16x128xi32>
    %61 = arith.xori %58, %60 : vector<16x128xi32>
    %c2146121005_i32_19 = arith.constant 2146121005 : i32
    %62 = vector.broadcast %c2146121005_i32_19 : i32 to vector<16x128xi32>
    %63 = arith.muli %61, %62 : vector<16x128xi32>
    %c15_i32_20 = arith.constant 15 : i32
    %64 = vector.broadcast %c15_i32_20 : i32 to vector<16x128xi32>
    %65 = arith.shrui %63, %64 : vector<16x128xi32>
    %66 = arith.xori %63, %65 : vector<16x128xi32>
    %c-2073254261_i32_21 = arith.constant -2073254261 : i32
    %67 = vector.broadcast %c-2073254261_i32_21 : i32 to vector<16x128xi32>
    %68 = arith.muli %66, %67 : vector<16x128xi32>
    %c16_i32_22 = arith.constant 16 : i32
    %69 = vector.broadcast %c16_i32_22 : i32 to vector<16x128xi32>
    %70 = arith.shrui %68, %69 : vector<16x128xi32>
    %71 = arith.xori %68, %70 : vector<16x128xi32>
    %c8_i32_23 = arith.constant 8 : i32
    %72 = vector.broadcast %c8_i32_23 : i32 to vector<16x128xi32>
    %73 = arith.shrui %71, %72 : vector<16x128xi32>
    %c13421772_i32_24 = arith.constant 13421772 : i32
    %74 = vector.broadcast %c13421772_i32_24 : i32 to vector<16x128xi32>
    %75 = arith.cmpi slt, %73, %74 : vector<16x128xi32>
    %cst_25 = arith.constant 0.000000e+00 : f32
    %76 = vector.broadcast %cst_25 : f32 to vector<16x128xf32>
    %77 = arith.select %75, %56, %76 : vector<16x128xi1>, vector<16x128xf32>
    %78 = arith.truncf %77 : vector<16x128xf32> to vector<16x128xbf16>
    %c0_26 = arith.constant 0 : index
    %c0_27 = arith.constant 0 : index
    %79 = vector.load %arg7[%c0_26, %c0_27] : memref<128x128xbf16, #tpu.memory_space<vmem>>, vector<128x128xbf16>
    %cst_28 = arith.constant dense<0.000000e+00> : vector<16x128xf32>
    %80 = tpu.matmul %78, %79, %cst_28 {dimension_numbers = #tpu.dot_dimension_numbers<[1], [0], [0], [1], [0, 0, 1, 1], [], []>} : vector<16x128xbf16>, vector<128x128xbf16>, vector<16x128xf32> -> vector<16x128xf32>
    %c0_29 = arith.constant 0 : index
    %c0_30 = arith.constant 0 : index
    %81 = vector.load %arg8[%c0_29, %c0_30] : memref<1x128xf32, #tpu.memory_space<vmem>>, vector<1x128xf32>
    %82 = vector.broadcast %81 : vector<1x128xf32> to vector<16x128xf32>
    %83 = arith.addf %80, %82 : vector<16x128xf32>
    %cst_31 = arith.constant 0.000000e+00 : f32
    %84 = vector.broadcast %cst_31 : f32 to vector<16x128xf32>
    %85 = arith.cmpf oge, %83, %84 : vector<16x128xf32>
    %cst_32 = arith.constant 2.000000e-01 : f32
    %86 = vector.broadcast %cst_32 : f32 to vector<16x128xf32>
    %87 = arith.mulf %86, %83 : vector<16x128xf32>
    %88 = arith.select %85, %83, %87 : vector<16x128xi1>, vector<16x128xf32>
    %c1209535135_i32 = arith.constant 1209535135 : i32
    %89 = vector.broadcast %c1209535135_i32 : i32 to vector<16x128xi32>
    %90 = arith.addi %13, %89 : vector<16x128xi32>
    %c16_i32_33 = arith.constant 16 : i32
    %91 = vector.broadcast %c16_i32_33 : i32 to vector<16x128xi32>
    %92 = arith.shrui %90, %91 : vector<16x128xi32>
    %93 = arith.xori %90, %92 : vector<16x128xi32>
    %c2146121005_i32_34 = arith.constant 2146121005 : i32
    %94 = vector.broadcast %c2146121005_i32_34 : i32 to vector<16x128xi32>
    %95 = arith.muli %93, %94 : vector<16x128xi32>
    %c15_i32_35 = arith.constant 15 : i32
    %96 = vector.broadcast %c15_i32_35 : i32 to vector<16x128xi32>
    %97 = arith.shrui %95, %96 : vector<16x128xi32>
    %98 = arith.xori %95, %97 : vector<16x128xi32>
    %c-2073254261_i32_36 = arith.constant -2073254261 : i32
    %99 = vector.broadcast %c-2073254261_i32_36 : i32 to vector<16x128xi32>
    %100 = arith.muli %98, %99 : vector<16x128xi32>
    %c16_i32_37 = arith.constant 16 : i32
    %101 = vector.broadcast %c16_i32_37 : i32 to vector<16x128xi32>
    %102 = arith.shrui %100, %101 : vector<16x128xi32>
    %103 = arith.xori %100, %102 : vector<16x128xi32>
    %c8_i32_38 = arith.constant 8 : i32
    %104 = vector.broadcast %c8_i32_38 : i32 to vector<16x128xi32>
    %105 = arith.shrui %103, %104 : vector<16x128xi32>
    %c13421772_i32_39 = arith.constant 13421772 : i32
    %106 = vector.broadcast %c13421772_i32_39 : i32 to vector<16x128xi32>
    %107 = arith.cmpi slt, %105, %106 : vector<16x128xi32>
    %cst_40 = arith.constant 0.000000e+00 : f32
    %108 = vector.broadcast %cst_40 : f32 to vector<16x128xf32>
    %109 = arith.select %107, %88, %108 : vector<16x128xi1>, vector<16x128xf32>
    %110 = arith.truncf %109 : vector<16x128xf32> to vector<16x128xbf16>
    %c0_41 = arith.constant 0 : index
    %c0_42 = arith.constant 0 : index
    %111 = vector.load %arg9[%c0_41, %c0_42] : memref<128x128xbf16, #tpu.memory_space<vmem>>, vector<128x128xbf16>
    %cst_43 = arith.constant dense<0.000000e+00> : vector<16x128xf32>
    %112 = tpu.matmul %110, %111, %cst_43 {dimension_numbers = #tpu.dot_dimension_numbers<[1], [0], [0], [1], [0, 0, 1, 1], [], []>} : vector<16x128xbf16>, vector<128x128xbf16>, vector<16x128xf32> -> vector<16x128xf32>
    %c0_44 = arith.constant 0 : index
    %c0_45 = arith.constant 0 : index
    %113 = vector.load %arg10[%c0_44, %c0_45] : memref<1x128xf32, #tpu.memory_space<vmem>>, vector<1x128xf32>
    %114 = vector.broadcast %113 : vector<1x128xf32> to vector<16x128xf32>
    %115 = arith.addf %112, %114 : vector<16x128xf32>
    %cst_46 = arith.constant 0.000000e+00 : f32
    %116 = vector.broadcast %cst_46 : f32 to vector<16x128xf32>
    %117 = arith.cmpf oge, %115, %116 : vector<16x128xf32>
    %cst_47 = arith.constant 2.000000e-01 : f32
    %118 = vector.broadcast %cst_47 : f32 to vector<16x128xf32>
    %119 = arith.mulf %118, %115 : vector<16x128xf32>
    %120 = arith.select %117, %115, %119 : vector<16x128xi1>, vector<16x128xf32>
    %c181057748_i32 = arith.constant 181057748 : i32
    %121 = vector.broadcast %c181057748_i32 : i32 to vector<16x128xi32>
    %122 = arith.addi %13, %121 : vector<16x128xi32>
    %c16_i32_48 = arith.constant 16 : i32
    %123 = vector.broadcast %c16_i32_48 : i32 to vector<16x128xi32>
    %124 = arith.shrui %122, %123 : vector<16x128xi32>
    %125 = arith.xori %122, %124 : vector<16x128xi32>
    %c2146121005_i32_49 = arith.constant 2146121005 : i32
    %126 = vector.broadcast %c2146121005_i32_49 : i32 to vector<16x128xi32>
    %127 = arith.muli %125, %126 : vector<16x128xi32>
    %c15_i32_50 = arith.constant 15 : i32
    %128 = vector.broadcast %c15_i32_50 : i32 to vector<16x128xi32>
    %129 = arith.shrui %127, %128 : vector<16x128xi32>
    %130 = arith.xori %127, %129 : vector<16x128xi32>
    %c-2073254261_i32_51 = arith.constant -2073254261 : i32
    %131 = vector.broadcast %c-2073254261_i32_51 : i32 to vector<16x128xi32>
    %132 = arith.muli %130, %131 : vector<16x128xi32>
    %c16_i32_52 = arith.constant 16 : i32
    %133 = vector.broadcast %c16_i32_52 : i32 to vector<16x128xi32>
    %134 = arith.shrui %132, %133 : vector<16x128xi32>
    %135 = arith.xori %132, %134 : vector<16x128xi32>
    %c8_i32_53 = arith.constant 8 : i32
    %136 = vector.broadcast %c8_i32_53 : i32 to vector<16x128xi32>
    %137 = arith.shrui %135, %136 : vector<16x128xi32>
    %c13421772_i32_54 = arith.constant 13421772 : i32
    %138 = vector.broadcast %c13421772_i32_54 : i32 to vector<16x128xi32>
    %139 = arith.cmpi slt, %137, %138 : vector<16x128xi32>
    %cst_55 = arith.constant 0.000000e+00 : f32
    %140 = vector.broadcast %cst_55 : f32 to vector<16x128xf32>
    %141 = arith.select %139, %120, %140 : vector<16x128xi1>, vector<16x128xf32>
    %142 = arith.truncf %141 : vector<16x128xf32> to vector<16x128xbf16>
    %c0_56 = arith.constant 0 : index
    %c0_57 = arith.constant 0 : index
    %143 = vector.load %arg11[%c0_56, %c0_57] : memref<128x128xbf16, #tpu.memory_space<vmem>>, vector<128x128xbf16>
    %cst_58 = arith.constant dense<0.000000e+00> : vector<16x128xf32>
    %144 = tpu.matmul %142, %143, %cst_58 {dimension_numbers = #tpu.dot_dimension_numbers<[1], [0], [0], [1], [0, 0, 1, 1], [], []>} : vector<16x128xbf16>, vector<128x128xbf16>, vector<16x128xf32> -> vector<16x128xf32>
    %c0_59 = arith.constant 0 : index
    %c0_60 = arith.constant 0 : index
    %145 = vector.load %arg12[%c0_59, %c0_60] : memref<1x128xf32, #tpu.memory_space<vmem>>, vector<1x128xf32>
    %146 = vector.broadcast %145 : vector<1x128xf32> to vector<16x128xf32>
    %147 = arith.addf %144, %146 : vector<16x128xf32>
    %c0_61 = arith.constant 0 : index
    %c0_62 = arith.constant 0 : index
    %148 = vector.load %arg13[%c0_61, %c0_62] : memref<16x128xf32, #tpu.memory_space<vmem>>, vector<16x128xf32>
    tpu.vector_store %arg13[%c0_61, %c0_62], %147 {strides = array<i32>} : memref<16x128xf32, #tpu.memory_space<vmem>>, vector<16x128xf32>,
    return
  }
  func.func @transform_0(%arg0: i32) -> i32 {
    %c0_i32 = arith.constant 0 : i32
    %c0_i32_0 = arith.constant 0 : i32
    return %c0_i32 : i32
  }
  func.func @transform_1(%arg0: i32) -> (i32, i32) {
    %c0_i32 = arith.constant 0 : i32
    %c0_i32_0 = arith.constant 0 : i32
    return %arg0, %c0_i32 : i32, i32
  }
  func.func @transform_2(%arg0: i32) -> (i32, i32) {
    %c0_i32 = arith.constant 0 : i32
    %c0_i32_0 = arith.constant 0 : i32
    %c0_i32_1 = arith.constant 0 : i32
    return %c0_i32, %c0_i32_0 : i32, i32
  }
  func.func @transform_3(%arg0: i32) -> (i32, i32) {
    %c0_i32 = arith.constant 0 : i32
    %c0_i32_0 = arith.constant 0 : i32
    %c0_i32_1 = arith.constant 0 : i32
    return %c0_i32, %c0_i32_0 : i32, i32
  }
  func.func @transform_4(%arg0: i32) -> (i32, i32) {
    %c0_i32 = arith.constant 0 : i32
    %c0_i32_0 = arith.constant 0 : i32
    %c0_i32_1 = arith.constant 0 : i32
    return %c0_i32, %c0_i32_0 : i32, i32
  }
  func.func @transform_5(%arg0: i32) -> (i32, i32) {
    %c0_i32 = arith.constant 0 : i32
    %c0_i32_0 = arith.constant 0 : i32
    %c0_i32_1 = arith.constant 0 : i32
    return %c0_i32, %c0_i32_0 : i32, i32
  }
  func.func @transform_6(%arg0: i32) -> (i32, i32) {
    %c0_i32 = arith.constant 0 : i32
    %c0_i32_0 = arith.constant 0 : i32
    %c0_i32_1 = arith.constant 0 : i32
    return %c0_i32, %c0_i32_0 : i32, i32
  }
  func.func @transform_7(%arg0: i32) -> (i32, i32) {
    %c0_i32 = arith.constant 0 : i32
    %c0_i32_0 = arith.constant 0 : i32
    %c0_i32_1 = arith.constant 0 : i32
    return %c0_i32, %c0_i32_0 : i32, i32
  }
  func.func @transform_8(%arg0: i32) -> (i32, i32) {
    %c0_i32 = arith.constant 0 : i32
    %c0_i32_0 = arith.constant 0 : i32
    %c0_i32_1 = arith.constant 0 : i32
    return %c0_i32, %c0_i32_0 : i32, i32
  }
  func.func @transform_9(%arg0: i32) -> (i32, i32) {
    %c0_i32 = arith.constant 0 : i32
    %c0_i32_0 = arith.constant 0 : i32
    %c0_i32_1 = arith.constant 0 : i32
    return %c0_i32, %c0_i32_0 : i32, i32
  }
  func.func @transform_10(%arg0: i32) -> (i32, i32) {
    %c0_i32 = arith.constant 0 : i32
    %c0_i32_0 = arith.constant 0 : i32
    %c0_i32_1 = arith.constant 0 : i32
    return %c0_i32, %c0_i32_0 : i32, i32
  }
  func.func @transform_11(%arg0: i32) -> (i32, i32) {
    %c0_i32 = arith.constant 0 : i32
    %c0_i32_0 = arith.constant 0 : i32
    %c0_i32_1 = arith.constant 0 : i32
    return %c0_i32, %c0_i32_0 : i32, i32
  }
  func.func @transform_12(%arg0: i32) -> (i32, i32) {
    %c0_i32 = arith.constant 0 : i32
    %c0_i32_0 = arith.constant 0 : i32
    return %arg0, %c0_i32 : i32, i32
  }
}

</mosaic_0001>

<llo_original>
// kernel: encoder_forward.1
$region0: #{encoder_forward.1}
  #allocation0 [shape = 'u32[]', space=smem, size = 0x4, offset = 0x4, fixed_abs, tag = 'smem constant byte address 0x4 - core index']
  #allocation1 [shape = 'u32[144,128]{1,0:T(1,128)}', space=vmem, size = 0x12000, scoped, tag = 'internal scratch']
  #allocation2 [shape = 's32[1]{0:T(128)S(6)}', space=smem, size = 0x200, scoped, tag = 'scoped memory for encoder_forward.1']
  %s0 = inlined_call_operand.<no memory space> [shape: s32[1], index: 0, kind: input, shape index: {}]
  %s1 = inlined_call_operand.vmem [shape: bf16[16,128], index: 1, kind: input, shape index: {}]
  %s2 = inlined_call_operand.vmem [shape: bf16[128,128], index: 2, kind: input, shape index: {}]
  %s3 = inlined_call_operand.vmem [shape: f32[1,128], index: 3, kind: input, shape index: {}]
  %s4 = inlined_call_operand.hbm [shape: bf16[128,128], index: 4, kind: input, shape index: {}]
  %s5 = inlined_call_operand.vmem [shape: f32[1,128], index: 5, kind: input, shape index: {}]
  %s6 = inlined_call_operand.hbm [shape: bf16[128,128], index: 6, kind: input, shape index: {}]
  %s7 = inlined_call_operand.vmem [shape: f32[1,128], index: 7, kind: input, shape index: {}]
  %s8 = inlined_call_operand.hbm [shape: bf16[128,128], index: 8, kind: input, shape index: {}]
  %s9 = inlined_call_operand.vmem [shape: f32[1,128], index: 9, kind: input, shape index: {}]
  %s10 = inlined_call_operand.hbm [shape: bf16[128,128], index: 10, kind: input, shape index: {}]
  %s11 = inlined_call_operand.vmem [shape: f32[1,128], index: 11, kind: input, shape index: {}]
  %s12 = inlined_call_operand.vmem [shape: f32[16,128], index: 12, kind: output, shape index: {}]
  %s13 = sld [smem:[#allocation0]]
  $region74: #{encoder_forward.1} parent=0
    _
  %s15 = ssub.s32 1, %s13
  %s16 = scalar_select 0, %s15, %s13
  %17 = sst [smem:[#allocation2]] %s0
  $region1: #{encoder_forward.1} parent=0
    #allocation3 [shape = 'u8[32768]{0}', space=vmem, size = 0x8000, scoped, tag = 'input window, operand 4, single buffered']
    #allocation4 [shape = 's32[1]{0}', space=sflag, size = 0x4, scoped, tag = 'scoped memory for encoder_forward.1']
    #allocation5 [shape = 'u8[32768]{0}', space=vmem, size = 0x8000, scoped, tag = 'input window, operand 6, single buffered']
    #allocation6 [shape = 's32[1]{0}', space=sflag, size = 0x4, scoped, tag = 'scoped memory for encoder_forward.1']
    #allocation7 [shape = 'u8[32768]{0}', space=vmem, size = 0x8000, scoped, tag = 'input window, operand 8, single buffered']
    #allocation8 [shape = 'u8[32768]{0}', space=vmem, size = 0x8000, scoped, tag = 'input window, operand 10, single buffered']
    #allocation9 [shape = 's32[1]{0}', space=sflag, size = 0x4, scoped, tag = 'scoped memory for encoder_forward.1']
    %18 = vsyncpa [#allocation4], 0
    %19 = vsyncpa [#allocation6], 0
    %20 = vsyncpa [#allocation9], 0
    // Predicated region
    $region2: #{encoder_forward.1} parent=1 // pred_check
      _
    $region3: #{encoder_forward.1} parent=1 // pred_check_branch
      %22 = sbr.rel (0) target = $region5
    $region4: #{encoder_forward.1} parent=1 // pred_region
      _
    $region5: #{encoder_forward.1} parent=1 // pred_fallthru
      _
    // Predicated region
    $region6: #{encoder_forward.1} parent=1 // pred_check
      _
    $region7: #{encoder_forward.1} parent=1 // pred_check_branch
      %24 = sbr.rel (0) target = $region9
    $region8: #{encoder_forward.1} parent=1 // pred_region
      _
    $region9: #{encoder_forward.1} parent=1 // pred_fallthru
      _
    // Predicated region
    $region10: #{encoder_forward.1} parent=1 // pred_check
      _
    $region11: #{encoder_forward.1} parent=1 // pred_check_branch
      %26 = sbr.rel (0) target = $region13
    $region12: #{encoder_forward.1} parent=1 // pred_region
      _
    $region13: #{encoder_forward.1} parent=1 // pred_fallthru
      _
    // Predicated region
    $region14: #{encoder_forward.1} parent=1 // pred_check
      _
    $region15: #{encoder_forward.1} parent=1 // pred_check_branch
      %28 = sbr.rel (0) target = $region17
    $region16: #{encoder_forward.1} parent=1 // pred_region
      _
    $region17: #{encoder_forward.1} parent=1 // pred_fallthru
      _
    // Predicated region
    $region18: #{encoder_forward.1} parent=1 // pred_check
      _
    $region19: #{encoder_forward.1} parent=1 // pred_check_branch
      %30 = sbr.rel (0) target = $region21
    $region20: #{encoder_forward.1} parent=1 // pred_region
      %s32 = ssub.s32 1024, 1024
      %33 = vsyncadd [#allocation4], %s32
      %s34 = sshll.u32 [#allocation3], 4
      %s35 = int_to_ptr.vmem [resolvable:$true] %s34
      %40 = dma.hbm_to_vmem [thread:$0]  %s4, 1024, %s35, [#allocation4], 64, 64, 4
    $region21: #{encoder_forward.1} parent=1 // pred_fallthru
      _
    // Predicated region
    $region22: #{encoder_forward.1} parent=1 // pred_check
      _
    $region23: #{encoder_forward.1} parent=1 // pred_check_branch
      %42 = sbr.rel (0) target = $region25
    $region24: #{encoder_forward.1} parent=1 // pred_region
      _
    $region25: #{encoder_forward.1} parent=1 // pred_fallthru
      _
    // Predicated region
    $region26: #{encoder_forward.1} parent=1 // pred_check
      _
    $region27: #{encoder_forward.1} parent=1 // pred_check_branch
      %44 = sbr.rel (0) target = $region29
    $region28: #{encoder_forward.1} parent=1 // pred_region
      %s46 = ssub.s32 1024, 1024
      %47 = vsyncadd [#allocation6], %s46
      %s48 = sshll.u32 [#allocation5], 4
      %s49 = int_to_ptr.vmem [resolvable:$true] %s48
      %54 = dma.hbm_to_vmem [thread:$0]  %s6, 1024, %s49, [#allocation6], 64, 64, 4
    $region29: #{encoder_forward.1} parent=1 // pred_fallthru
      _
    // Predicated region
    $region30: #{encoder_forward.1} parent=1 // pred_check
      _
    $region31: #{encoder_forward.1} parent=1 // pred_check_branch
      %56 = sbr.rel (0) target = $region33
    $region32: #{encoder_forward.1} parent=1 // pred_region
      _
    $region33: #{encoder_forward.1} parent=1 // pred_fallthru
      _
    // Predicated region
    $region34: #{encoder_forward.1} parent=1 // pred_check
      _
    $region35: #{encoder_forward.1} parent=1 // pred_check_branch
      %58 = sbr.rel (0) target = $region37
    $region36: #{encoder_forward.1} parent=1 // pred_region
      %s60 = ssub.s32 1024, 1024
      %61 = vsyncadd [#allocation6], %s60
      %s62 = sshll.u32 [#allocation7], 4
      %s63 = int_to_ptr.vmem [resolvable:$true] %s62
      %68 = dma.hbm_to_vmem [thread:$0]  %s8, 1024, %s63, [#allocation6], 64, 64, 4
    $region37: #{encoder_forward.1} parent=1 // pred_fallthru
      _
    // Predicated region
    $region38: #{encoder_forward.1} parent=1 // pred_check
      _
    $region39: #{encoder_forward.1} parent=1 // pred_check_branch
      %70 = sbr.rel (0) target = $region41
    $region40: #{encoder_forward.1} parent=1 // pred_region
      _
    $region41: #{encoder_forward.1} parent=1 // pred_fallthru
      _
    // Predicated region
    $region42: #{encoder_forward.1} parent=1 // pred_check
      _
    $region43: #{encoder_forward.1} parent=1 // pred_check_branch
      %72 = sbr.rel (0) target = $region45
    $region44: #{encoder_forward.1} parent=1 // pred_region
      %s74 = ssub.s32 1024, 1024
      %75 = vsyncadd [#allocation9], %s74
      %s76 = sshll.u32 [#allocation8], 4
      %s77 = int_to_ptr.vmem [resolvable:$true] %s76
      %82 = dma.hbm_to_vmem [thread:$0]  %s10, 1024, %s77, [#allocation9], 64, 64, 4
    $region45: #{encoder_forward.1} parent=1 // pred_fallthru
      _
    // Predicated region
    $region46: #{encoder_forward.1} parent=1 // pred_check
      _
    $region47: #{encoder_forward.1} parent=1 // pred_check_branch
      %84 = sbr.rel (0) target = $region49
    $region48: #{encoder_forward.1} parent=1 // pred_region
      _
    $region49: #{encoder_forward.1} parent=1 // pred_fallthru
      _
    // Predicated region
    $region50: #{encoder_forward.1} parent=1 // pred_check
      _
    $region51: #{encoder_forward.1} parent=1 // pred_check_branch
      %86 = sbr.rel (0) target = $region53
    $region52: #{encoder_forward.1} parent=1 // pred_region
      %87 = dma.done [#allocation4], 1024
    $region53: #{encoder_forward.1} parent=1 // pred_fallthru
      _
    // Predicated region
    $region54: #{encoder_forward.1} parent=1 // pred_check
      _
    $region55: #{encoder_forward.1} parent=1 // pred_check_branch
      %89 = sbr.rel (0) target = $region57
    $region56: #{encoder_forward.1} parent=1 // pred_region
      %90 = dma.done [#allocation6], 1024
    $region57: #{encoder_forward.1} parent=1 // pred_fallthru
      _
    // Predicated region
    $region58: #{encoder_forward.1} parent=1 // pred_check
      _
    $region59: #{encoder_forward.1} parent=1 // pred_check_branch
      %92 = sbr.rel (0) target = $region61
    $region60: #{encoder_forward.1} parent=1 // pred_region
      %93 = dma.done [#allocation6], 1024
    $region61: #{encoder_forward.1} parent=1 // pred_fallthru
      _
    // Predicated region
    $region62: #{encoder_forward.1} parent=1 // pred_check
      _
    $region63: #{encoder_forward.1} parent=1 // pred_check_branch
      %95 = sbr.rel (0) target = $region65
    $region64: #{encoder_forward.1} parent=1 // pred_region
      %96 = dma.done [#allocation9], 1024
    $region65: #{encoder_forward.1} parent=1 // pred_fallthru
      _
    %s98 = sld [smem:[#allocation2]]
    %s99 = smul.u32 0, 16
    %v100 = vlaneseq
    %v101 = vshrl.u32 %v100, 7
    %v102 = vadd.s32 %v101, 8
    %v103 = vstv %s99
    %v104 = vadd.s32 %v101, %v103
    %v105 = vadd.s32 %v102, %v103
    %v106 = vlaneseq
    %v107 = vand.u32 %v106, 127
    %v108 = vmul.u32 %v104, 2654435769
    %v109 = vmul.u32 %v105, 2654435769
    %v110 = vmul.u32 %v107, 2246822507
    %v111 = vxor.u32 %v108, %v110
    %v112 = vxor.u32 %v109, %v110
    %s113 = smul.u32 %s98, 747796405
    %v114 = vstv %s113
    %v115 = vadd.s32 %v111, %v114
    %v116 = vadd.s32 %v112, %v114
    %v117 = vld [vmem:[%s1] sm:$0xf]
    %v118 = vld [vmem:[%s1 + $0x4] sm:$0xf]
    %v119 = vld [vmem:[%s2] sm:$0xf]
    %v120 = vld [vmem:[%s2 + $0x4] sm:$0xf]
    %v121 = vld [vmem:[%s2 + $0x8] sm:$0xf]
    %v122 = vld [vmem:[%s2 + $0xc] sm:$0xf]
    %v123 = vld [vmem:[%s2 + $0x10] sm:$0xf]
    %v124 = vld [vmem:[%s2 + $0x14] sm:$0xf]
    %v125 = vld [vmem:[%s2 + $0x18] sm:$0xf]
    %v126 = vld [vmem:[%s2 + $0x1c] sm:$0xf]
    %v127 = vld [vmem:[%s2 + $0x20] sm:$0xf]
    %v128 = vld [vmem:[%s2 + $0x24] sm:$0xf]
    %v129 = vld [vmem:[%s2 + $0x28] sm:$0xf]
    %v130 = vld [vmem:[%s2 + $0x2c] sm:$0xf]
    %v131 = vld [vmem:[%s2 + $0x30] sm:$0xf]
    %v132 = vld [vmem:[%s2 + $0x34] sm:$0xf]
    %v133 = vld [vmem:[%s2 + $0x38] sm:$0xf]
    %v134 = vld [vmem:[%s2 + $0x3c] sm:$0xf]
    %v135 = vld [vmem:[%s3] sm:$0x1]
    %v137 = vlaneseq
    %v138 = vshrl.u32 %v137, 7
    %v139 = vsub.s32 0, %v138
    %v140 = vrot.slane %v135, %v139
    %v144 = vunpack.c.l.b16 %v117
    %v145 = vunpack.c.l.b16 %v118
    %v146 = vpack.c.b16 %v145, %v144
    %v164 = vunpack.c.l.b16 %v119
    %v165 = vunpack.c.l.b16 %v120
    %v166 = vunpack.c.l.b16 %v121
    %v167 = vunpack.c.l.b16 %v122
    %v168 = vunpack.c.l.b16 %v123
    %v169 = vunpack.c.l.b16 %v124
    %v170 = vunpack.c.l.b16 %v125
    %v171 = vunpack.c.l.b16 %v126
    %v172 = vunpack.c.l.b16 %v127
    %v173 = vunpack.c.l.b16 %v128
    %v174 = vunpack.c.l.b16 %v129
    %v175 = vunpack.c.l.b16 %v130
    %v176 = vunpack.c.l.b16 %v131
    %v177 = vunpack.c.l.b16 %v132
    %v178 = vunpack.c.l.b16 %v133
    %v179 = vunpack.c.l.b16 %v134
    %v180 = vpack.c.b16 %v165, %v164
    %v181 = vpack.c.b16 %v167, %v166
    %v182 = vpack.c.b16 %v169, %v168
    %v183 = vpack.c.b16 %v171, %v170
    %v184 = vpack.c.b16 %v173, %v172
    %v185 = vpack.c.b16 %v175, %v174
    %v186 = vpack.c.b16 %v177, %v176
    %v187 = vpack.c.b16 %v179, %v178
    %196 = vmatprep.subr.bf16.mxu0 0
    %197 = vmatpush1.bf16.msra.mxu0 %v180
    %198 = vmatprep.subr.bf16.mxu0 0
    %199 = vmatpush1.bf16.msra.mxu0 %v181
    %200 = vmatprep.subr.bf16.mxu0 0
    %201 = vmatpush1.bf16.msra.mxu0 %v182
    %202 = vmatprep.subr.bf16.mxu0 0
    %203 = vmatpush1.bf16.msra.mxu0 %v183
    %204 = vmatprep.subr.bf16.mxu0 0
    %205 = vmatpush1.bf16.msra.mxu0 %v184
    %206 = vmatprep.subr.bf16.mxu0 0
    %207 = vmatpush1.bf16.msra.mxu0 %v185
    %208 = vmatprep.subr.bf16.mxu0 0
    %209 = vmatpush1.bf16.msra.mxu0 %v186
    %210 = vmatprep.subr.bf16.mxu0 0
    %211 = vmatpush1.bf16.msra.mxu0 %v187
    %212 = vmatprep.subr.bf16.mxu0 0
    %213 = vmatpush1.bf16.msra.mxu0 0
    %214 = vmatprep.subr.bf16.mxu0 0
    %215 = vmatpush1.bf16.msra.mxu0 0
    %216 = vmatprep.subr.bf16.mxu0 0
    %217 = vmatpush1.bf16.msra.mxu0 0
    %218 = vmatprep.subr.bf16.mxu0 0
    %219 = vmatpush1.bf16.msra.mxu0 0
    %220 = vmatprep.subr.bf16.mxu0 0
    %221 = vmatpush1.bf16.msra.mxu0 0
    %222 = vmatprep.subr.bf16.mxu0 0
    %223 = vmatpush1.bf16.msra.mxu0 0
    %224 = vmatprep.subr.bf16.mxu0 0
    %225 = vmatpush1.bf16.msra.mxu0 0
    %226 = vmatprep.subr.bf16.mxu0 0
    %227 = vmatpush1.bf16.msra.mxu0 0
    %228 = vmatprep.mubr.bf16.mxu0 0
    %229 = vmatmul.mubr.bf16.gmra.mrb[0].mxu0 %v146
    %v230 = vpop.f32.mrb[0].mxu0
    %v231 = vadd.f32 %v140, %v230
    %v232 = vpop.f32.mrb[0].mxu0
    %v233 = vpop.f32.mrb[0].mxu0
    %v234 = vadd.f32 %v140, %v233
    %v235 = vpop.f32.mrb[0].mxu0
    %236 = vdwg.mxu0
    %vm237 = vcmp.ge.f32.partialorder %v231, 0.0
    %vm238 = vcmp.ge.f32.partialorder %v234, 0.0
    %v239 = vmul.f32 %v231, 0.2
    %v240 = vmul.f32 %v234, 0.2
    %v241 = vsel %vm237, %v231, %v239
    %v242 = vsel %vm238, %v234, %v240
    %v243 = vadd.s32 %v115, 3266489909
    %v244 = vadd.s32 %v116, 3266489909
    %v245 = vshrl.u32 %v243, 16
    %v246 = vshrl.u32 %v244, 16
    %v247 = vxor.u32 %v243, %v245
    %v248 = vxor.u32 %v244, %v246
    %v249 = vmul.u32 %v247, 2146121005
    %v250 = vmul.u32 %v248, 2146121005
    %v251 = vshrl.u32 %v249, 15
    %v252 = vshrl.u32 %v250, 15
    %v253 = vxor.u32 %v249, %v251
    %v254 = vxor.u32 %v250, %v252
    %v255 = vmul.u32 %v253, 2221713035
    %v256 = vmul.u32 %v254, 2221713035
    %v257 = vshrl.u32 %v255, 16
    %v258 = vshrl.u32 %v256, 16
    %v259 = vxor.u32 %v255, %v257
    %v260 = vxor.u32 %v256, %v258
    %v261 = vshrl.u32 %v259, 8
    %v262 = vshrl.u32 %v260, 8
    %vm263 = vcmp.lt.s32.totalorder %v261, 13421772
    %vm264 = vcmp.lt.s32.totalorder %v262, 13421772
    %v265 = vsel %vm263, %v241, 0.0
    %v266 = vsel %vm264, %v242, 0.0
    %v267 = vpack.c.bf16 %v266, %v265
    %v268 = vld [vmem:[#allocation3] sm:$0xf]
    %v269 = vld [vmem:[#allocation3 + $0x4] sm:$0xf]
    %v270 = vld [vmem:[#allocation3 + $0x8] sm:$0xf]
    %v271 = vld [vmem:[#allocation3 + $0xc] sm:$0xf]
    %v272 = vld [vmem:[#allocation3 + $0x10] sm:$0xf]
    %v273 = vld [vmem:[#allocation3 + $0x14] sm:$0xf]
    %v274 = vld [vmem:[#allocation3 + $0x18] sm:$0xf]
    %v275 = vld [vmem:[#allocation3 + $0x1c] sm:$0xf]
    %v276 = vld [vmem:[#allocation3 + $0x20] sm:$0xf]
    %v277 = vld [vmem:[#allocation3 + $0x24] sm:$0xf]
    %v278 = vld [vmem:[#allocation3 + $0x28] sm:$0xf]
    %v279 = vld [vmem:[#allocation3 + $0x2c] sm:$0xf]
    %v280 = vld [vmem:[#allocation3 + $0x30] sm:$0xf]
    %v281 = vld [vmem:[#allocation3 + $0x34] sm:$0xf]
    %v282 = vld [vmem:[#allocation3 + $0x38] sm:$0xf]
    %v283 = vld [vmem:[#allocation3 + $0x3c] sm:$0xf]
    %v284 = vld [vmem:[%s5] sm:$0x1]
    %v286 = vlaneseq
    %v287 = vshrl.u32 %v286, 7
    %v288 = vsub.s32 0, %v287
    %v289 = vrot.slane %v284, %v288
    %v307 = vunpack.c.l.b16 %v268
    %v308 = vunpack.c.l.b16 %v269
    %v309 = vunpack.c.l.b16 %v270
    %v310 = vunpack.c.l.b16 %v271
    %v311 = vunpack.c.l.b16 %v272
    %v312 = vunpack.c.l.b16 %v273
    %v313 = vunpack.c.l.b16 %v274
    %v314 = vunpack.c.l.b16 %v275
    %v315 = vunpack.c.l.b16 %v276
    %v316 = vunpack.c.l.b16 %v277
    %v317 = vunpack.c.l.b16 %v278
    %v318 = vunpack.c.l.b16 %v279
    %v319 = vunpack.c.l.b16 %v280
    %v320 = vunpack.c.l.b16 %v281
    %v321 = vunpack.c.l.b16 %v282
    %v322 = vunpack.c.l.b16 %v283
    %v323 = vpack.c.b16 %v308, %v307
    %v324 = vpack.c.b16 %v310, %v309
    %v325 = vpack.c.b16 %v312, %v311
    %v326 = vpack.c.b16 %v314, %v313
    %v327 = vpack.c.b16 %v316, %v315
    %v328 = vpack.c.b16 %v318, %v317
    %v329 = vpack.c.b16 %v320, %v319
    %v330 = vpack.c.b16 %v322, %v321
    %339 = vmatprep.subr.bf16.mxu0 0
    %340 = vmatpush1.bf16.msra.mxu0 %v323
    %341 = vmatprep.subr.bf16.mxu0 0
    %342 = vmatpush1.bf16.msra.mxu0 %v324
    %343 = vmatprep.subr.bf16.mxu0 0
    %344 = vmatpush1.bf16.msra.mxu0 %v325
    %345 = vmatprep.subr.bf16.mxu0 0
    %346 = vmatpush1.bf16.msra.mxu0 %v326
    %347 = vmatprep.subr.bf16.mxu0 0
    %348 = vmatpush1.bf16.msra.mxu0 %v327
    %349 = vmatprep.subr.bf16.mxu0 0
    %350 = vmatpush1.bf16.msra.mxu0 %v328
    %351 = vmatprep.subr.bf16.mxu0 0
    %352 = vmatpush1.bf16.msra.mxu0 %v329
    %353 = vmatprep.subr.bf16.mxu0 0
    %354 = vmatpush1.bf16.msra.mxu0 %v330
    %355 = vmatprep.subr.bf16.mxu0 0
    %356 = vmatpush1.bf16.msra.mxu0 0
    %357 = vmatprep.subr.bf16.mxu0 0
    %358 = vmatpush1.bf16.msra.mxu0 0
    %359 = vmatprep.subr.bf16.mxu0 0
    %360 = vmatpush1.bf16.msra.mxu0 0
    %361 = vmatprep.subr.bf16.mxu0 0
    %362 = vmatpush1.bf16.msra.mxu0 0
    %363 = vmatprep.subr.bf16.mxu0 0
    %364 = vmatpush1.bf16.msra.mxu0 0
    %365 = vmatprep.subr.bf16.mxu0 0
    %366 = vmatpush1.bf16.msra.mxu0 0
    %367 = vmatprep.subr.bf16.mxu0 0
    %368 = vmatpush1.bf16.msra.mxu0 0
    %369 = vmatprep.subr.bf16.mxu0 0
    %370 = vmatpush1.bf16.msra.mxu0 0
    %371 = vmatprep.mubr.bf16.mxu0 0
    %372 = vmatmul.mubr.bf16.gmra.mrb[0].mxu0 %v267
    %v373 = vpop.f32.mrb[0].mxu0
    %v374 = vadd.f32 %v289, %v373
    %v375 = vpop.f32.mrb[0].mxu0
    %v376 = vpop.f32.mrb[0].mxu0
    %v377 = vadd.f32 %v289, %v376
    %v378 = vpop.f32.mrb[0].mxu0
    %379 = vdwg.mxu0
    %vm380 = vcmp.ge.f32.partialorder %v374, 0.0
    %vm381 = vcmp.ge.f32.partialorder %v377, 0.0
    %v382 = vmul.f32 %v374, 0.2
    %v383 = vmul.f32 %v377, 0.2
    %v384 = vsel %vm380, %v374, %v382
    %v385 = vsel %vm381, %v377, %v383
    %v386 = vadd.s32 %v115, 2238012522
    %v387 = vadd.s32 %v116, 2238012522
    %v388 = vshrl.u32 %v386, 16
    %v389 = vshrl.u32 %v387, 16
    %v390 = vxor.u32 %v386, %v388
    %v391 = vxor.u32 %v387, %v389
    %v392 = vmul.u32 %v390, 2146121005
    %v393 = vmul.u32 %v391, 2146121005
    %v394 = vshrl.u32 %v392, 15
    %v395 = vshrl.u32 %v393, 15
    %v396 = vxor.u32 %v392, %v394
    %v397 = vxor.u32 %v393, %v395
    %v398 = vmul.u32 %v396, 2221713035
    %v399 = vmul.u32 %v397, 2221713035
    %v400 = vshrl.u32 %v398, 16
    %v401 = vshrl.u32 %v399, 16
    %v402 = vxor.u32 %v398, %v400
    %v403 = vxor.u32 %v399, %v401
    %v404 = vshrl.u32 %v402, 8
    %v405 = vshrl.u32 %v403, 8
    %vm406 = vcmp.lt.s32.totalorder %v404, 13421772
    %vm407 = vcmp.lt.s32.totalorder %v405, 13421772
    %v408 = vsel %vm406, %v384, 0.0
    %v409 = vsel %vm407, %v385, 0.0
    %v410 = vpack.c.bf16 %v409, %v408
    %v411 = vld [vmem:[#allocation5] sm:$0xf]
    %v412 = vld [vmem:[#allocation5 + $0x4] sm:$0xf]
    %v413 = vld [vmem:[#allocation5 + $0x8] sm:$0xf]
    %v414 = vld [vmem:[#allocation5 + $0xc] sm:$0xf]
    %v415 = vld [vmem:[#allocation5 + $0x10] sm:$0xf]
    %v416 = vld [vmem:[#allocation5 + $0x14] sm:$0xf]
    %v417 = vld [vmem:[#allocation5 + $0x18] sm:$0xf]
    %v418 = vld [vmem:[#allocation5 + $0x1c] sm:$0xf]
    %v419 = vld [vmem:[#allocation5 + $0x20] sm:$0xf]
    %v420 = vld [vmem:[#allocation5 + $0x24] sm:$0xf]
    %v421 = vld [vmem:[#allocation5 + $0x28] sm:$0xf]
    %v422 = vld [vmem:[#allocation5 + $0x2c] sm:$0xf]
    %v423 = vld [vmem:[#allocation5 + $0x30] sm:$0xf]
    %v424 = vld [vmem:[#allocation5 + $0x34] sm:$0xf]
    %v425 = vld [vmem:[#allocation5 + $0x38] sm:$0xf]
    %v426 = vld [vmem:[#allocation5 + $0x3c] sm:$0xf]
    %v427 = vld [vmem:[%s7] sm:$0x1]
    %v429 = vlaneseq
    %v430 = vshrl.u32 %v429, 7
    %v431 = vsub.s32 0, %v430
    %v432 = vrot.slane %v427, %v431
    %v450 = vunpack.c.l.b16 %v411
    %v451 = vunpack.c.l.b16 %v412
    %v452 = vunpack.c.l.b16 %v413
    %v453 = vunpack.c.l.b16 %v414
    %v454 = vunpack.c.l.b16 %v415
    %v455 = vunpack.c.l.b16 %v416
    %v456 = vunpack.c.l.b16 %v417
    %v457 = vunpack.c.l.b16 %v418
    %v458 = vunpack.c.l.b16 %v419
    %v459 = vunpack.c.l.b16 %v420
    %v460 = vunpack.c.l.b16 %v421
    %v461 = vunpack.c.l.b16 %v422
    %v462 = vunpack.c.l.b16 %v423
    %v463 = vunpack.c.l.b16 %v424
    %v464 = vunpack.c.l.b16 %v425
    %v465 = vunpack.c.l.b16 %v426
    %v466 = vpack.c.b16 %v451, %v450
    %v467 = vpack.c.b16 %v453, %v452
    %v468 = vpack.c.b16 %v455, %v454
    %v469 = vpack.c.b16 %v457, %v456
    %v470 = vpack.c.b16 %v459, %v458
    %v471 = vpack.c.b16 %v461, %v460
    %v472 = vpack.c.b16 %v463, %v462
    %v473 = vpack.c.b16 %v465, %v464
    %482 = vmatprep.subr.bf16.mxu0 0
    %483 = vmatpush1.bf16.msra.mxu0 %v466
    %484 = vmatprep.subr.bf16.mxu0 0
    %485 = vmatpush1.bf16.msra.mxu0 %v467
    %486 = vmatprep.subr.bf16.mxu0 0
    %487 = vmatpush1.bf16.msra.mxu0 %v468
    %488 = vmatprep.subr.bf16.mxu0 0
    %489 = vmatpush1.bf16.msra.mxu0 %v469
    %490 = vmatprep.subr.bf16.mxu0 0
    %491 = vmatpush1.bf16.msra.mxu0 %v470
    %492 = vmatprep.subr.bf16.mxu0 0
    %493 = vmatpush1.bf16.msra.mxu0 %v471
    %494 = vmatprep.subr.bf16.mxu0 0
    %495 = vmatpush1.bf16.msra.mxu0 %v472
    %496 = vmatprep.subr.bf16.mxu0 0
    %497 = vmatpush1.bf16.msra.mxu0 %v473
    %498 = vmatprep.subr.bf16.mxu0 0
    %499 = vmatpush1.bf16.msra.mxu0 0
    %500 = vmatprep.subr.bf16.mxu0 0
    %501 = vmatpush1.bf16.msra.mxu0 0
    %502 = vmatprep.subr.bf16.mxu0 0
    %503 = vmatpush1.bf16.msra.mxu0 0
    %504 = vmatprep.subr.bf16.mxu0 0
    %505 = vmatpush1.bf16.msra.mxu0 0
    %506 = vmatprep.subr.bf16.mxu0 0
    %507 = vmatpush1.bf16.msra.mxu0 0
    %508 = vmatprep.subr.bf16.mxu0 0
    %509 = vmatpush1.bf16.msra.mxu0 0
    %510 = vmatprep.subr.bf16.mxu0 0
    %511 = vmatpush1.bf16.msra.mxu0 0
    %512 = vmatprep.subr.bf16.mxu0 0
    %513 = vmatpush1.bf16.msra.mxu0 0
    %514 = vmatprep.mubr.bf16.mxu0 0
    %515 = vmatmul.mubr.bf16.gmra.mrb[0].mxu0 %v410
    %v516 = vpop.f32.mrb[0].mxu0
    %v517 = vadd.f32 %v432, %v516
    %v518 = vpop.f32.mrb[0].mxu0
    %v519 = vpop.f32.mrb[0].mxu0
    %v520 = vadd.f32 %v432, %v519
    %v521 = vpop.f32.mrb[0].mxu0
    %522 = vdwg.mxu0
    %vm523 = vcmp.ge.f32.partialorder %v517, 0.0
    %vm524 = vcmp.ge.f32.partialorder %v520, 0.0
    %v525 = vmul.f32 %v517, 0.2
    %v526 = vmul.f32 %v520, 0.2
    %v527 = vsel %vm523, %v517, %v525
    %v528 = vsel %vm524, %v520, %v526
    %v529 = vadd.s32 %v115, 1209535135
    %v530 = vadd.s32 %v116, 1209535135
    %v531 = vshrl.u32 %v529, 16
    %v532 = vshrl.u32 %v530, 16
    %v533 = vxor.u32 %v529, %v531
    %v534 = vxor.u32 %v530, %v532
    %v535 = vmul.u32 %v533, 2146121005
    %v536 = vmul.u32 %v534, 2146121005
    %v537 = vshrl.u32 %v535, 15
    %v538 = vshrl.u32 %v536, 15
    %v539 = vxor.u32 %v535, %v537
    %v540 = vxor.u32 %v536, %v538
    %v541 = vmul.u32 %v539, 2221713035
    %v542 = vmul.u32 %v540, 2221713035
    %v543 = vshrl.u32 %v541, 16
    %v544 = vshrl.u32 %v542, 16
    %v545 = vxor.u32 %v541, %v543
    %v546 = vxor.u32 %v542, %v544
    %v547 = vshrl.u32 %v545, 8
    %v548 = vshrl.u32 %v546, 8
    %vm549 = vcmp.lt.s32.totalorder %v547, 13421772
    %vm550 = vcmp.lt.s32.totalorder %v548, 13421772
    %v551 = vsel %vm549, %v527, 0.0
    %v552 = vsel %vm550, %v528, 0.0
    %v553 = vpack.c.bf16 %v552, %v551
    %v554 = vld [vmem:[#allocation7] sm:$0xf]
    %v555 = vld [vmem:[#allocation7 + $0x4] sm:$0xf]
    %v556 = vld [vmem:[#allocation7 + $0x8] sm:$0xf]
    %v557 = vld [vmem:[#allocation7 + $0xc] sm:$0xf]
    %v558 = vld [vmem:[#allocation7 + $0x10] sm:$0xf]
    %v559 = vld [vmem:[#allocation7 + $0x14] sm:$0xf]
    %v560 = vld [vmem:[#allocation7 + $0x18] sm:$0xf]
    %v561 = vld [vmem:[#allocation7 + $0x1c] sm:$0xf]
    %v562 = vld [vmem:[#allocation7 + $0x20] sm:$0xf]
    %v563 = vld [vmem:[#allocation7 + $0x24] sm:$0xf]
    %v564 = vld [vmem:[#allocation7 + $0x28] sm:$0xf]
    %v565 = vld [vmem:[#allocation7 + $0x2c] sm:$0xf]
    %v566 = vld [vmem:[#allocation7 + $0x30] sm:$0xf]
    %v567 = vld [vmem:[#allocation7 + $0x34] sm:$0xf]
    %v568 = vld [vmem:[#allocation7 + $0x38] sm:$0xf]
    %v569 = vld [vmem:[#allocation7 + $0x3c] sm:$0xf]
    %v570 = vld [vmem:[%s9] sm:$0x1]
    %v572 = vlaneseq
    %v573 = vshrl.u32 %v572, 7
    %v574 = vsub.s32 0, %v573
    %v575 = vrot.slane %v570, %v574
    %v593 = vunpack.c.l.b16 %v554
    %v594 = vunpack.c.l.b16 %v555
    %v595 = vunpack.c.l.b16 %v556
    %v596 = vunpack.c.l.b16 %v557
    %v597 = vunpack.c.l.b16 %v558
    %v598 = vunpack.c.l.b16 %v559
    %v599 = vunpack.c.l.b16 %v560
    %v600 = vunpack.c.l.b16 %v561
    %v601 = vunpack.c.l.b16 %v562
    %v602 = vunpack.c.l.b16 %v563
    %v603 = vunpack.c.l.b16 %v564
    %v604 = vunpack.c.l.b16 %v565
    %v605 = vunpack.c.l.b16 %v566
    %v606 = vunpack.c.l.b16 %v567
    %v607 = vunpack.c.l.b16 %v568
    %v608 = vunpack.c.l.b16 %v569
    %v609 = vpack.c.b16 %v594, %v593
    %v610 = vpack.c.b16 %v596, %v595
    %v611 = vpack.c.b16 %v598, %v597
    %v612 = vpack.c.b16 %v600, %v599
    %v613 = vpack.c.b16 %v602, %v601
    %v614 = vpack.c.b16 %v604, %v603
    %v615 = vpack.c.b16 %v606, %v605
    %v616 = vpack.c.b16 %v608, %v607
    %625 = vmatprep.subr.bf16.mxu0 0
    %626 = vmatpush1.bf16.msra.mxu0 %v609
    %627 = vmatprep.subr.bf16.mxu0 0
    %628 = vmatpush1.bf16.msra.mxu0 %v610
    %629 = vmatprep.subr.bf16.mxu0 0
    %630 = vmatpush1.bf16.msra.mxu0 %v611
    %631 = vmatprep.subr.bf16.mxu0 0
    %632 = vmatpush1.bf16.msra.mxu0 %v612
    %633 = vmatprep.subr.bf16.mxu0 0
    %634 = vmatpush1.bf16.msra.mxu0 %v613
    %635 = vmatprep.subr.bf16.mxu0 0
    %636 = vmatpush1.bf16.msra.mxu0 %v614
    %637 = vmatprep.subr.bf16.mxu0 0
    %638 = vmatpush1.bf16.msra.mxu0 %v615
    %639 = vmatprep.subr.bf16.mxu0 0
    %640 = vmatpush1.bf16.msra.mxu0 %v616
    %641 = vmatprep.subr.bf16.mxu0 0
    %642 = vmatpush1.bf16.msra.mxu0 0
    %643 = vmatprep.subr.bf16.mxu0 0
    %644 = vmatpush1.bf16.msra.mxu0 0
    %645 = vmatprep.subr.bf16.mxu0 0
    %646 = vmatpush1.bf16.msra.mxu0 0
    %647 = vmatprep.subr.bf16.mxu0 0
    %648 = vmatpush1.bf16.msra.mxu0 0
    %649 = vmatprep.subr.bf16.mxu0 0
    %650 = vmatpush1.bf16.msra.mxu0 0
    %651 = vmatprep.subr.bf16.mxu0 0
    %652 = vmatpush1.bf16.msra.mxu0 0
    %653 = vmatprep.subr.bf16.mxu0 0
    %654 = vmatpush1.bf16.msra.mxu0 0
    %655 = vmatprep.subr.bf16.mxu0 0
    %656 = vmatpush1.bf16.msra.mxu0 0
    %657 = vmatprep.mubr.bf16.mxu0 0
    %658 = vmatmul.mubr.bf16.gmra.mrb[0].mxu0 %v553
    %v659 = vpop.f32.mrb[0].mxu0
    %v660 = vadd.f32 %v575, %v659
    %v661 = vpop.f32.mrb[0].mxu0
    %v662 = vpop.f32.mrb[0].mxu0
    %v663 = vadd.f32 %v575, %v662
    %v664 = vpop.f32.mrb[0].mxu0
    %665 = vdwg.mxu0
    %vm666 = vcmp.ge.f32.partialorder %v660, 0.0
    %vm667 = vcmp.ge.f32.partialorder %v663, 0.0
    %v668 = vmul.f32 %v660, 0.2
    %v669 = vmul.f32 %v663, 0.2
    %v670 = vsel %vm666, %v660, %v668
    %v671 = vsel %vm667, %v663, %v669
    %v672 = vadd.s32 %v115, 181057748
    %v673 = vadd.s32 %v116, 181057748
    %v674 = vshrl.u32 %v672, 16
    %v675 = vshrl.u32 %v673, 16
    %v676 = vxor.u32 %v672, %v674
    %v677 = vxor.u32 %v673, %v675
    %v678 = vmul.u32 %v676, 2146121005
    %v679 = vmul.u32 %v677, 2146121005
    %v680 = vshrl.u32 %v678, 15
    %v681 = vshrl.u32 %v679, 15
    %v682 = vxor.u32 %v678, %v680
    %v683 = vxor.u32 %v679, %v681
    %v684 = vmul.u32 %v682, 2221713035
    %v685 = vmul.u32 %v683, 2221713035
    %v686 = vshrl.u32 %v684, 16
    %v687 = vshrl.u32 %v685, 16
    %v688 = vxor.u32 %v684, %v686
    %v689 = vxor.u32 %v685, %v687
    %v690 = vshrl.u32 %v688, 8
    %v691 = vshrl.u32 %v689, 8
    %vm692 = vcmp.lt.s32.totalorder %v690, 13421772
    %vm693 = vcmp.lt.s32.totalorder %v691, 13421772
    %v694 = vsel %vm692, %v670, 0.0
    %v695 = vsel %vm693, %v671, 0.0
    %v696 = vpack.c.bf16 %v695, %v694
    %v697 = vld [vmem:[#allocation8] sm:$0xf]
    %v698 = vld [vmem:[#allocation8 + $0x4] sm:$0xf]
    %v699 = vld [vmem:[#allocation8 + $0x8] sm:$0xf]
    %v700 = vld [vmem:[#allocation8 + $0xc] sm:$0xf]
    %v701 = vld [vmem:[#allocation8 + $0x10] sm:$0xf]
    %v702 = vld [vmem:[#allocation8 + $0x14] sm:$0xf]
    %v703 = vld [vmem:[#allocation8 + $0x18] sm:$0xf]
    %v704 = vld [vmem:[#allocation8 + $0x1c] sm:$0xf]
    %v705 = vld [vmem:[#allocation8 + $0x20] sm:$0xf]
    %v706 = vld [vmem:[#allocation8 + $0x24] sm:$0xf]
    %v707 = vld [vmem:[#allocation8 + $0x28] sm:$0xf]
    %v708 = vld [vmem:[#allocation8 + $0x2c] sm:$0xf]
    %v709 = vld [vmem:[#allocation8 + $0x30] sm:$0xf]
    %v710 = vld [vmem:[#allocation8 + $0x34] sm:$0xf]
    %v711 = vld [vmem:[#allocation8 + $0x38] sm:$0xf]
    %v712 = vld [vmem:[#allocation8 + $0x3c] sm:$0xf]
    %v713 = vld [vmem:[%s11] sm:$0x1]
    %v715 = vlaneseq
    %v716 = vshrl.u32 %v715, 7
    %v717 = vsub.s32 0, %v716
    %v718 = vrot.slane %v713, %v717
    %v736 = vunpack.c.l.b16 %v697
    %v737 = vunpack.c.l.b16 %v698
    %v738 = vunpack.c.l.b16 %v699
    %v739 = vunpack.c.l.b16 %v700
    %v740 = vunpack.c.l.b16 %v701
    %v741 = vunpack.c.l.b16 %v702
    %v742 = vunpack.c.l.b16 %v703
    %v743 = vunpack.c.l.b16 %v704
    %v744 = vunpack.c.l.b16 %v705
    %v745 = vunpack.c.l.b16 %v706
    %v746 = vunpack.c.l.b16 %v707
    %v747 = vunpack.c.l.b16 %v708
    %v748 = vunpack.c.l.b16 %v709
    %v749 = vunpack.c.l.b16 %v710
    %v750 = vunpack.c.l.b16 %v711
    %v751 = vunpack.c.l.b16 %v712
    %v752 = vpack.c.b16 %v737, %v736
    %v753 = vpack.c.b16 %v739, %v738
    %v754 = vpack.c.b16 %v741, %v740
    %v755 = vpack.c.b16 %v743, %v742
    %v756 = vpack.c.b16 %v745, %v744
    %v757 = vpack.c.b16 %v747, %v746
    %v758 = vpack.c.b16 %v749, %v748
    %v759 = vpack.c.b16 %v751, %v750
    %768 = vmatprep.subr.bf16.mxu0 0
    %769 = vmatpush1.bf16.msra.mxu0 %v752
    %770 = vmatprep.subr.bf16.mxu0 0
    %771 = vmatpush1.bf16.msra.mxu0 %v753
    %772 = vmatprep.subr.bf16.mxu0 0
    %773 = vmatpush1.bf16.msra.mxu0 %v754
    %774 = vmatprep.subr.bf16.mxu0 0
    %775 = vmatpush1.bf16.msra.mxu0 %v755
    %776 = vmatprep.subr.bf16.mxu0 0
    %777 = vmatpush1.bf16.msra.mxu0 %v756
    %778 = vmatprep.subr.bf16.mxu0 0
    %779 = vmatpush1.bf16.msra.mxu0 %v757
    %780 = vmatprep.subr.bf16.mxu0 0
    %781 = vmatpush1.bf16.msra.mxu0 %v758
    %782 = vmatprep.subr.bf16.mxu0 0
    %783 = vmatpush1.bf16.msra.mxu0 %v759
    %784 = vmatprep.subr.bf16.mxu0 0
    %785 = vmatpush1.bf16.msra.mxu0 0
    %786 = vmatprep.subr.bf16.mxu0 0
    %787 = vmatpush1.bf16.msra.mxu0 0
    %788 = vmatprep.subr.bf16.mxu0 0
    %789 = vmatpush1.bf16.msra.mxu0 0
    %790 = vmatprep.subr.bf16.mxu0 0
    %791 = vmatpush1.bf16.msra.mxu0 0
    %792 = vmatprep.subr.bf16.mxu0 0
    %793 = vmatpush1.bf16.msra.mxu0 0
    %794 = vmatprep.subr.bf16.mxu0 0
    %795 = vmatpush1.bf16.msra.mxu0 0
    %796 = vmatprep.subr.bf16.mxu0 0
    %797 = vmatpush1.bf16.msra.mxu0 0
    %798 = vmatprep.subr.bf16.mxu0 0
    %799 = vmatpush1.bf16.msra.mxu0 0
    %800 = vmatprep.mubr.bf16.mxu0 0
    %801 = vmatmul.mubr.bf16.gmra.mrb[0].mxu0 %v696
    %v802 = vpop.f32.mrb[0].mxu0
    %v803 = vadd.f32 %v718, %v802
    %v804 = vpop.f32.mrb[0].mxu0
    %v805 = vpop.f32.mrb[0].mxu0
    %v806 = vadd.f32 %v718, %v805
    %v807 = vpop.f32.mrb[0].mxu0
    %808 = vdwg.mxu0
    %809 = vst [vmem:[%s12] sm:$0xff] %v803
    %810 = vst [vmem:[%s12 + $0x8] sm:$0xff] %v806
    // Predicated region
    $region66: #{encoder_forward.1} parent=1 // pred_check
      _
    $region67: #{encoder_forward.1} parent=1 // pred_check_branch
      %812 = sbr.rel (0) target = $region69
    $region68: #{encoder_forward.1} parent=1 // pred_region
      _
    $region69: #{encoder_forward.1} parent=1 // pred_fallthru
      _
    // Predicated region
    $region70: #{encoder_forward.1} parent=1 // pred_check
      _
    $region71: #{encoder_forward.1} parent=1 // pred_check_branch
      %814 = sbr.rel (0) target = $region73
    $region72: #{encoder_forward.1} parent=1 // pred_region
      _
    $region73: #{encoder_forward.1} parent=1 // pred_fallthru
      _
    %815 = vsyncpa [#allocation4], 1
    %816 = vsyncpa [#allocation6], 1
    %817 = vsyncpa [#allocation9], 1

</llo_original>
